<compile_context>
chip_gen: v7x
topology: tpu7x:2x2x1
jax: 0.10.0
libtpu: 0.0.40
codegen_flags: <defaults>
</compile_context>

<pallas_src>
import math

import jax
import jax.numpy as jnp
from jax.experimental import pallas as pl
from jax.experimental.pallas import tpu as pltpu


# Below roughly one MXU-saturating tile of work, skip Pallas and let XLA fuse.
_PALLAS_MIN_WORK = 128 * 128 * 128


def _round_up(x, m):
    return ((x + m - 1) // m) * m


def _vmem_capacity_bytes():
    """Physical VMEM of the current chip generation (conservative fallback)."""
    try:
        info = pltpu.get_tpu_info()
        cap = getattr(info, "vmem_capacity_bytes", None)
        if cap:
            return int(cap)
    except Exception:
        pass
    return 64 << 20  # v7x per-TensorCore VMEM (most restrictive)


def _largest_tile(padded, align, cap):
    """Largest multiple of `align` that divides `padded` and is <= cap.

    Never rounds `padded` up to a multiple of the cap (no over-padding).
    """
    best = align
    t = align
    limit = min(cap, padded)
    while t <= limit:
        if padded % t == 0:
            best = t
        t += align
    return best


def _matmul_bias_noacc_kernel(x_ref, w_ref, b_ref, o_ref):
    # Single-pass: full-K tile, bias fused, no accumulator / no pl.when.
    o_ref[...] = (
        jnp.dot(x_ref[...], w_ref[...], preferred_element_type=jnp.float32)
        + b_ref[...].astype(jnp.float32)
    ).astype(o_ref.dtype)


def _matmul_bias_acc_kernel(x_ref, w_ref, b_ref, o_ref, acc_ref):
    k = pl.program_id(2)

    @pl.when(k == 0)
    def _init():
        acc_ref[...] = jnp.zeros_like(acc_ref)

    acc_ref[...] += jnp.dot(
        x_ref[...], w_ref[...], preferred_element_type=jnp.float32
    )

    @pl.when(k == pl.num_programs(2) - 1)
    def _finalize():
        # Bias added exactly once, in the epilogue.
        o_ref[...] = (acc_ref[...] + b_ref[...].astype(jnp.float32)).astype(
            o_ref.dtype
        )


def pallas_linear(x, w_p, b_p, d_out, *, force_tiled=False, tile_caps=None):
    """x: [N, D_in] (unpadded); w_p: [Kp, Dp] zero-padded weight (Kp, Dp are
    128-multiples); b_p: [1, Dp] zero-padded bias.  Returns [N, d_out]."""
    N, D_in = x.shape
    Kp, Dp = w_p.shape
    assert Kp % 128 == 0 and Dp % 128 == 0
    dtype = x.dtype

    vmem_cap = _vmem_capacity_bytes()
    vmem_limit = min(vmem_cap * 3 // 4, 100 << 20)   # 48 MiB v7x / 96 MiB v5e-v6e
    budget = int(vmem_limit * 0.8)                   # headroom for compiler scratch

    Np = _round_up(N, 8)
    # Pad x once per call; K padding MUST be zeros (it feeds the reduction).
    if Np != N or Kp != D_in:
        x = jnp.pad(x, ((0, Np - N), (0, Kp - D_in)))

    w_bytes = Kp * Dp * 4
    use_resident = (not force_tiled) and (w_bytes <= min(8 << 20, vmem_limit // 6))

    if use_resident:
        # --- W-resident fast path: 1-D grid over M, W/bias DMA'd once. ------
        tm_fit = (budget - 2 * w_bytes - 8 * Dp) // (8 * (Kp + Dp))
        tm_cap = max(8, min(1024, (tm_fit // 8) * 8))
        if Np >= 256:
            # Keep >= 2 blocks on the parallel M axis so both v7x TCs get work.
            tm_cap = min(tm_cap, max(128, (Np // 2 // 8) * 8))
        tm = _largest_tile(Np, 8, tm_cap)

        out = pl.pallas_call(
            _matmul_bias_noacc_kernel,
            out_shape=jax.ShapeDtypeStruct((Np, Dp), dtype),
            grid_spec=pltpu.PrefetchScalarGridSpec(
                num_scalar_prefetch=0,
                grid=(Np // tm,),
                in_specs=[
                    pl.BlockSpec((tm, Kp), lambda i: (i, 0)),
                    pl.BlockSpec((Kp, Dp), lambda i: (0, 0)),   # resident
                    pl.BlockSpec((1, Dp), lambda i: (0, 0)),    # resident
                ],
                out_specs=pl.BlockSpec((tm, Dp), lambda i: (i, 0)),
            ),
            compiler_params=pltpu.CompilerParams(
                dimension_semantics=("parallel",),
                vmem_limit_bytes=vmem_limit,
            ),
            cost_estimate=pl.CostEstimate(
                flops=2 * Np * Kp * Dp,
                transcendentals=0,
                bytes_accessed=4 * (Np * Kp + Kp * Dp + Np * Dp + Dp),
            ),
        )(x, w_p, b_p)
    else:
        # --- General tiled path (large W): grid (i, j[, k]). -----------------
        if tile_caps is not None:
            tm_cap, tn_cap, tk_cap = tile_caps
        elif vmem_cap >= (100 << 20):      # v5e / v6e: 128 MiB VMEM
            tm_cap, tn_cap, tk_cap = 512, 2048, 2048
        else:                              # v7x: 64 MiB VMEM
            tm_cap, tn_cap, tk_cap = 512, 1024, 1024

        tk = _largest_tile(Kp, 128, tk_cap)
        tn = _largest_tile(Dp, 128, tn_cap)
        if Np >= 256:
            tm_cap = min(tm_cap, max(128, (Np // 2 // 8) * 8))
        tm = _largest_tile(Np, 8, tm_cap)

        gi, gj, gk = Np // tm, Dp // tn, Kp // tk
        cost = pl.CostEstimate(
            flops=2 * Np * Kp * Dp,
            transcendentals=0,
            # W streamed gi times, x streamed gj times under this tiling.
            bytes_accessed=4 * (Np * Kp * gj + Kp * Dp * gi + Np * Dp + Dp),
        )

        if gk == 1:
            # Whole K fits in one tile: no accumulator, no pl.when.
            out = pl.pallas_call(
                _matmul_bias_noacc_kernel,
                out_shape=jax.ShapeDtypeStruct((Np, Dp), dtype),
                grid_spec=pltpu.PrefetchScalarGridSpec(
                    num_scalar_prefetch=0,
                    grid=(gi, gj),
                    in_specs=[
                        pl.BlockSpec((tm, Kp), lambda i, j: (i, 0)),
                        pl.BlockSpec((Kp, tn), lambda i, j: (0, j)),
                        pl.BlockSpec((1, tn), lambda i, j: (0, j)),
                    ],
                    out_specs=pl.BlockSpec((tm, tn), lambda i, j: (i, j)),
                ),
                compiler_params=pltpu.CompilerParams(
                    dimension_semantics=("parallel", "parallel"),
                    vmem_limit_bytes=vmem_limit,
                ),
                cost_estimate=cost,
            )(x, w_p, b_p)
        else:
            out = pl.pallas_call(
                _matmul_bias_acc_kernel,
                out_shape=jax.ShapeDtypeStruct((Np, Dp), dtype),
                grid_spec=pltpu.PrefetchScalarGridSpec(
                    num_scalar_prefetch=0,
                    grid=(gi, gj, gk),
                    in_specs=[
                        pl.BlockSpec((tm, tk), lambda i, j, k: (i, k)),
                        pl.BlockSpec((tk, tn), lambda i, j, k: (k, j)),
                        pl.BlockSpec((1, tn), lambda i, j, k: (0, j)),
                    ],
                    out_specs=pl.BlockSpec((tm, tn), lambda i, j, k: (i, j)),
                    scratch_shapes=[pltpu.VMEM((tm, tn), jnp.float32)],
                ),
                compiler_params=pltpu.CompilerParams(
                    dimension_semantics=("parallel", "parallel", "arbitrary"),
                    vmem_limit_bytes=vmem_limit,
                ),
                cost_estimate=cost,
            )(x, w_p, b_p)

    if Np != N or Dp != d_out:
        out = out[:N, :d_out]
    return out


class FeatureAdapter:
    """JAX/Pallas port of the PyTorch FeatureAdapter module."""

    def __init__(self, input_dim, target_dim, strategy="projection", key=None):
        self.input_dim = input_dim
        self.target_dim = target_dim
        self.strategy = strategy
        if strategy == "projection":
            if key is None:
                key = jax.random.PRNGKey(0)
            k_w, k_b = jax.random.split(key)
            # Deterministic init matching nn.Linear's U(-1/sqrt(fan_in), ...).
            bound = 1.0 / math.sqrt(input_dim)
            # stored already transposed: [D_in, D_out]
            self.weight = jax.random.uniform(
                k_w, (input_dim, target_dim), jnp.float32, -bound, bound
            )
            self.bias = jax.random.uniform(
                k_b, (1, target_dim), jnp.float32, -bound, bound
            )
            # Static lane-dense padding done ONCE here (not per forward call).
            kp = _round_up(input_dim, 128)
            dp = _round_up(target_dim, 128)
            self.weight_p = jnp.pad(
                self.weight, ((0, kp - input_dim), (0, dp - target_dim))
            )
            self.bias_p = jnp.pad(self.bias, ((0, 0), (0, dp - target_dim)))
        elif strategy in ("padding", "truncation"):
            pass
        else:
            raise ValueError(f"Unknown strategy: {strategy}")

    def __call__(self, x):
        if self.input_dim == self.target_dim:
            return x
        if self.strategy == "projection":
            # Tiny problems: launch/DMA overhead dominates -> let XLA fuse.
            if x.shape[0] * self.input_dim * self.target_dim < _PALLAS_MIN_WORK:
                return (x @ self.weight + self.bias).astype(x.dtype)
            return pallas_linear(x, self.weight_p, self.bias_p, self.target_dim)
        elif self.strategy == "padding":
            # pure data movement -> plain JAX glue
            if self.input_dim < self.target_dim:
                pad = jnp.zeros(
                    (x.shape[0], self.target_dim - self.input_dim), x.dtype
                )
                return jnp.concatenate([x, pad], axis=1)
            else:
                return x[:, : self.target_dim]
        elif self.strategy == "truncation":
            if self.input_dim > self.target_dim:
                return x[:, : self.target_dim]
            else:
                pad = jnp.zeros(
                    (x.shape[0], self.target_dim - self.input_dim), x.dtype
                )
                return jnp.concatenate([x, pad], axis=1)


if __name__ == "__main__":
    key = jax.random.PRNGKey(0)
    k_x1, k_x2, k_p1, k_p2 = jax.random.split(key, 4)

    # --- tiny shape: adapter takes the XLA-fallback path ---------------------
    N0, Din0, Dout0 = 8, 32, 64
    x0 = jax.random.normal(k_x1, (N0, Din0), jnp.float32)
    adapter0 = FeatureAdapter(Din0, Dout0, strategy="projection", key=k_p1)
    out0 = jax.block_until_ready(adapter0(x0))
    ref0 = x0 @ adapter0.weight + adapter0.bias
    assert out0.shape == (N0, Dout0), out0.shape
    assert jnp.allclose(out0, ref0, atol=1e-5, rtol=1e-5)

    # The Pallas W-resident kernel also handles the tiny shape (via padding).
    out0_k = jax.block_until_ready(
        pallas_linear(x0, adapter0.weight_p, adapter0.bias_p, Dout0)
    )
    assert out0_k.shape == (N0, Dout0), out0_k.shape
    assert jnp.allclose(out0_k, ref0, atol=2e-3, rtol=2e-3)

    # --- moderate shape: adapter takes the Pallas W-resident fast path -------
    N1, Din1, Dout1 = 512, 384, 320
    x1 = jax.random.normal(k_x2, (N1, Din1), jnp.float32)
    adapter1 = FeatureAdapter(Din1, Dout1, strategy="projection", key=k_p2)
    out1 = jax.block_until_ready(adapter1(x1))
    ref1 = (
        jnp.dot(x1, adapter1.weight, precision=jax.lax.Precision.HIGHEST)
        + adapter1.bias
    )
    assert out1.shape == (N1, Dout1), out1.shape
    assert jnp.allclose(out1, ref1, atol=2e-3, rtol=2e-3)

    # --- tiled no-accumulator variant (K fits in one tile, 2-D grid) ---------
    out1_t = jax.block_until_ready(
        pallas_linear(x1, adapter1.weight_p, adapter1.bias_p, Dout1,
                      force_tiled=True)
    )
    assert jnp.allclose(out1_t, ref1, atol=2e-3, rtol=2e-3)

    # --- tiled accumulator variant (K split across the reduction axis) -------
    out1_a = jax.block_until_ready(
        pallas_linear(x1, adapter1.weight_p, adapter1.bias_p, Dout1,
                      force_tiled=True, tile_caps=(128, 128, 128))
    )
    assert jnp.allclose(out1_a, ref1, atol=2e-3, rtol=2e-3)

    # --- non-projection strategies (pure data movement, plain JAX) -----------
    pad_out = FeatureAdapter(Din0, Dout0, strategy="padding")(x0)
    trunc_out = FeatureAdapter(Din0, 16, strategy="truncation")(x0)
    jax.block_until_ready((pad_out, trunc_out))
    assert pad_out.shape == (N0, Dout0) and trunc_out.shape == (N0, 16)

    print("KERNEL_OK")
</pallas_src>

<mosaic_0001>
module attributes {stable_mosaic.version = 11 : i64} {
  func.func @_matmul_bias_noacc_kernel(%arg0: i32, %arg1: memref<8x128xf32, #tpu.memory_space<vmem>>, %arg2: memref<128x128xf32, #tpu.memory_space<vmem>>, %arg3: memref<1x128xf32, #tpu.memory_space<vmem>>, %arg4: memref<8x128xf32, #tpu.memory_space<vmem>>) attributes {dimension_semantics = [#tpu.dimension_semantics<parallel>], iteration_bounds = array<i64: 1>, scalar_prefetch = 0 : i64, scratch_operands = 0 : i64, tpu.core_type = #tpu.core_type<tc>, window_params = [{transform_indices = @transform_0, window_bounds = array<i64: 8, 128>}, {pipeline_mode = #tpu.pipeline_mode<synchronous>, transform_indices = @transform_1, window_bounds = array<i64: 128, 128>}, {pipeline_mode = #tpu.pipeline_mode<synchronous>, transform_indices = @transform_2, window_bounds = array<i64: 1, 128>}, {transform_indices = @transform_3, window_bounds = array<i64: 8, 128>}]} {
    %c0 = arith.constant 0 : index
    %c0_0 = arith.constant 0 : index
    %0 = vector.load %arg1[%c0, %c0_0] : memref<8x128xf32, #tpu.memory_space<vmem>>, vector<8x128xf32>
    %c0_1 = arith.constant 0 : index
    %c0_2 = arith.constant 0 : index
    %1 = vector.load %arg2[%c0_1, %c0_2] : memref<128x128xf32, #tpu.memory_space<vmem>>, vector<128x128xf32>
    %cst = arith.constant dense<0.000000e+00> : vector<8x128xf32>
    %2 = tpu.matmul %0, %1, %cst {dimension_numbers = #tpu.dot_dimension_numbers<[1], [0], [0], [1], [0, 0, 1, 1], [], []>} : vector<8x128xf32>, vector<128x128xf32>, vector<8x128xf32> -> vector<8x128xf32>
    %c0_3 = arith.constant 0 : index
    %c0_4 = arith.constant 0 : index
    %3 = vector.load %arg3[%c0_3, %c0_4] : memref<1x128xf32, #tpu.memory_space<vmem>>, vector<1x128xf32>
    %4 = vector.broadcast %3 : vector<1x128xf32> to vector<8x128xf32>
    %5 = arith.addf %2, %4 : vector<8x128xf32>
    %c0_5 = arith.constant 0 : index
    %c0_6 = arith.constant 0 : index
    %6 = vector.load %arg4[%c0_5, %c0_6] : memref<8x128xf32, #tpu.memory_space<vmem>>, vector<8x128xf32>
    tpu.vector_store %arg4[%c0_5, %c0_6], %5 {strides = array<i32>} : memref<8x128xf32, #tpu.memory_space<vmem>>, vector<8x128xf32>,
    return
  }
  func.func @transform_0(%arg0: i32) -> (i32, i32) {
    %c0_i32 = arith.constant 0 : i32
    %c0_i32_0 = arith.constant 0 : i32
    return %arg0, %c0_i32 : i32, i32
  }
  func.func @transform_1(%arg0: i32) -> (i32, i32) {
    %c0_i32 = arith.constant 0 : i32
    %c0_i32_0 = arith.constant 0 : i32
    %c0_i32_1 = arith.constant 0 : i32
    return %c0_i32, %c0_i32_0 : i32, i32
  }
  func.func @transform_2(%arg0: i32) -> (i32, i32) {
    %c0_i32 = arith.constant 0 : i32
    %c0_i32_0 = arith.constant 0 : i32
    %c0_i32_1 = arith.constant 0 : i32
    return %c0_i32, %c0_i32_0 : i32, i32
  }
  func.func @transform_3(%arg0: i32) -> (i32, i32) {
    %c0_i32 = arith.constant 0 : i32
    %c0_i32_0 = arith.constant 0 : i32
    return %arg0, %c0_i32 : i32, i32
  }
}

</mosaic_0001>

<llo_original>
// kernel: tpu_custom_call.1
$region0: #{tpu_custom_call.1}
  #allocation0 [shape = 'u32[]', space=smem, size = 0x4, offset = 0x4, fixed_abs, tag = 'smem constant byte address 0x4 - core index']
  #allocation1 [shape = 'u32[144,128]{1,0:T(1,128)}', space=vmem, size = 0x12000, scoped, tag = 'internal scratch']
  %s0 = inlined_call_operand.hbm [shape: f32[8,128], index: 0, kind: input, shape index: {}]
  %s1 = inlined_call_operand.hbm [shape: f32[128,128], index: 1, kind: input, shape index: {}]
  %s2 = inlined_call_operand.vmem [shape: f32[1,128], index: 2, kind: input, shape index: {}]
  %s3 = inlined_call_operand.hbm [shape: f32[8,128], index: 3, kind: output, shape index: {}]
  %s4 = sld [smem:[#allocation0]]
  $region30: #{tpu_custom_call.1} parent=0
    _
  %s6 = ssub.s32 1, %s4
  %s7 = scalar_select 0, %s6, %s4
  $region1: #{tpu_custom_call.1} parent=0
    #allocation2 [shape = 'u8[4096]{0}', space=vmem, size = 0x1000, scoped, tag = 'input window, operand 0, single buffered']
    #allocation3 [shape = 's32[1]{0}', space=sflag, size = 0x4, scoped, tag = 'scoped memory for tpu_custom_call.1']
    #allocation4 [shape = 's32[1]{0}', space=sflag, size = 0x4, scoped, tag = 'scoped memory for tpu_custom_call.1']
    #allocation5 [shape = 'u8[65536]{0}', space=vmem, size = 0x10000, scoped, tag = 'input window, operand 1, single buffered']
    #allocation6 [shape = 's32[1]{0}', space=sflag, size = 0x4, scoped, tag = 'scoped memory for tpu_custom_call.1']
    #allocation7 [shape = 'u8[4096]{0}', space=vmem, size = 0x1000, scoped, tag = 'output window, operand 0, single buffered']
    %8 = vsyncpa [#allocation3], 0
    %9 = vsyncpa [#allocation6], 0
    %10 = vsyncpa [#allocation4], 0
    // Predicated region
    $region2: #{tpu_custom_call.1} parent=1 // pred_check
      _
    $region3: #{tpu_custom_call.1} parent=1 // pred_check_branch
      %12 = sbr.rel (0) target = $region5
    $region4: #{tpu_custom_call.1} parent=1 // pred_region
      %s14 = ssub.s32 128, 128
      %15 = vsyncadd [#allocation3], %s14
      %s17 = sshll.u32 [#allocation2], 4
      %s18 = int_to_ptr.vmem [resolvable:$true] %s17
      %20 = dma.hbm_to_vmem [thread:$0]  %s0, 128, %s18, [#allocation3]
    $region5: #{tpu_custom_call.1} parent=1 // pred_fallthru
      _
    // Predicated region
    $region6: #{tpu_custom_call.1} parent=1 // pred_check
      _
    $region7: #{tpu_custom_call.1} parent=1 // pred_check_branch
      %22 = sbr.rel (0) target = $region9
    $region8: #{tpu_custom_call.1} parent=1 // pred_region
      %s24 = ssub.s32 2048, 2048
      %25 = vsyncadd [#allocation6], %s24
      %s26 = sshll.u32 [#allocation5], 4
      %s27 = int_to_ptr.vmem [resolvable:$true] %s26
      %32 = dma.hbm_to_vmem [thread:$0]  %s1, 2048, %s27, [#allocation6], 128, 128, 8
    $region9: #{tpu_custom_call.1} parent=1 // pred_fallthru
      _
    // Predicated region
    $region10: #{tpu_custom_call.1} parent=1 // pred_check
      _
    $region11: #{tpu_custom_call.1} parent=1 // pred_check_branch
      %34 = sbr.rel (0) target = $region13
    $region12: #{tpu_custom_call.1} parent=1 // pred_region
      _
    $region13: #{tpu_custom_call.1} parent=1 // pred_fallthru
      _
    // Predicated region
    $region14: #{tpu_custom_call.1} parent=1 // pred_check
      _
    $region15: #{tpu_custom_call.1} parent=1 // pred_check_branch
      %36 = sbr.rel (0) target = $region17
    $region16: #{tpu_custom_call.1} parent=1 // pred_region
      %37 = dma.done [#allocation3], 128
    $region17: #{tpu_custom_call.1} parent=1 // pred_fallthru
      _
    // Predicated region
    $region18: #{tpu_custom_call.1} parent=1 // pred_check
      _
    $region19: #{tpu_custom_call.1} parent=1 // pred_check_branch
      %39 = sbr.rel (0) target = $region21
    $region20: #{tpu_custom_call.1} parent=1 // pred_region
      %40 = dma.done [#allocation6], 2048
    $region21: #{tpu_custom_call.1} parent=1 // pred_fallthru
      _
    %v41 = vld [vmem:[#allocation2] sm:$0xff]
    %v42 = vld [vmem:[#allocation5] sm:$0xff]
    %v43 = vld [vmem:[#allocation5 + $0x8] sm:$0xff]
    %v44 = vld [vmem:[#allocation5 + $0x10] sm:$0xff]
    %v45 = vld [vmem:[#allocation5 + $0x18] sm:$0xff]
    %v46 = vld [vmem:[#allocation5 + $0x20] sm:$0xff]
    %v47 = vld [vmem:[#allocation5 + $0x28] sm:$0xff]
    %v48 = vld [vmem:[#allocation5 + $0x30] sm:$0xff]
    %v49 = vld [vmem:[#allocation5 + $0x38] sm:$0xff]
    %v50 = vld [vmem:[#allocation5 + $0x40] sm:$0xff]
    %v51 = vld [vmem:[#allocation5 + $0x48] sm:$0xff]
    %v52 = vld [vmem:[#allocation5 + $0x50] sm:$0xff]
    %v53 = vld [vmem:[#allocation5 + $0x58] sm:$0xff]
    %v54 = vld [vmem:[#allocation5 + $0x60] sm:$0xff]
    %v55 = vld [vmem:[#allocation5 + $0x68] sm:$0xff]
    %v56 = vld [vmem:[#allocation5 + $0x70] sm:$0xff]
    %v57 = vld [vmem:[#allocation5 + $0x78] sm:$0xff]
    %v58 = vld [vmem:[%s2] sm:$0x1]
    %v60 = vlaneseq
    %v61 = vshrl.u32 %v60, 7
    %v62 = vsub.s32 0, %v61
    %v63 = vrot.slane %v58, %v62
    %65 = vmatprep.subr.mxu0 0.0
    %66 = vmatpush1.msra.mxu0 %v42
    %67 = vmatprep.subr.mxu0 0.0
    %68 = vmatpush1.msra.mxu0 %v43
    %69 = vmatprep.subr.mxu0 0.0
    %70 = vmatpush1.msra.mxu0 %v44
    %71 = vmatprep.subr.mxu0 0.0
    %72 = vmatpush1.msra.mxu0 %v45
    %73 = vmatprep.subr.mxu0 0.0
    %74 = vmatpush1.msra.mxu0 %v46
    %75 = vmatprep.subr.mxu0 0.0
    %76 = vmatpush1.msra.mxu0 %v47
    %77 = vmatprep.subr.mxu0 0.0
    %78 = vmatpush1.msra.mxu0 %v48
    %79 = vmatprep.subr.mxu0 0.0
    %80 = vmatpush1.msra.mxu0 %v49
    %81 = vmatprep.subr.mxu0 0.0
    %82 = vmatpush1.msra.mxu0 %v50
    %83 = vmatprep.subr.mxu0 0.0
    %84 = vmatpush1.msra.mxu0 %v51
    %85 = vmatprep.subr.mxu0 0.0
    %86 = vmatpush1.msra.mxu0 %v52
    %87 = vmatprep.subr.mxu0 0.0
    %88 = vmatpush1.msra.mxu0 %v53
    %89 = vmatprep.subr.mxu0 0.0
    %90 = vmatpush1.msra.mxu0 %v54
    %91 = vmatprep.subr.mxu0 0.0
    %92 = vmatpush1.msra.mxu0 %v55
    %93 = vmatprep.subr.mxu0 0.0
    %94 = vmatpush1.msra.mxu0 %v56
    %95 = vmatprep.subr.mxu0 0.0
    %96 = vmatpush1.msra.mxu0 %v57
    %97 = vmatprep.subr.mxu0 0.0
    %98 = vmatpush1.msra.mxu0 0.0
    %99 = vmatprep.subr.mxu0 0.0
    %100 = vmatpush1.msra.mxu0 0.0
    %101 = vmatprep.subr.mxu0 0.0
    %102 = vmatpush1.msra.mxu0 0.0
    %103 = vmatprep.subr.mxu0 0.0
    %104 = vmatpush1.msra.mxu0 0.0
    %105 = vmatprep.subr.mxu0 0.0
    %106 = vmatpush1.msra.mxu0 0.0
    %107 = vmatprep.subr.mxu0 0.0
    %108 = vmatpush1.msra.mxu0 0.0
    %109 = vmatprep.subr.mxu0 0.0
    %110 = vmatpush1.msra.mxu0 0.0
    %111 = vmatprep.subr.mxu0 0.0
    %112 = vmatpush1.msra.mxu0 0.0
    %113 = vmatprep.subr.mxu0 0.0
    %114 = vmatpush1.msra.mxu0 0.0
    %115 = vmatprep.subr.mxu0 0.0
    %116 = vmatpush1.msra.mxu0 0.0
    %117 = vmatprep.subr.mxu0 0.0
    %118 = vmatpush1.msra.mxu0 0.0
    %119 = vmatprep.subr.mxu0 0.0
    %120 = vmatpush1.msra.mxu0 0.0
    %121 = vmatprep.subr.mxu0 0.0
    %122 = vmatpush1.msra.mxu0 0.0
    %123 = vmatprep.subr.mxu0 0.0
    %124 = vmatpush1.msra.mxu0 0.0
    %125 = vmatprep.subr.mxu0 0.0
    %126 = vmatpush1.msra.mxu0 0.0
    %127 = vmatprep.subr.mxu0 0.0
    %128 = vmatpush1.msra.mxu0 0.0
    %129 = vmatprep.mubr.f32.mxu0 0.0
    %130 = vmatmul.mubr.f32.gmra.mrb[0].mxu0 %v41
    %v131 = vpop.f32.mrb[0].mxu0
    %v132 = vadd.f32 %v63, %v131
    %v133 = vpop.f32.mrb[0].mxu0
    %134 = vdwg.mxu0
    %135 = vst [vmem:[#allocation7] sm:$0xff] %v132
    // Predicated region
    $region22: #{tpu_custom_call.1} parent=1 // pred_check
      _
    $region23: #{tpu_custom_call.1} parent=1 // pred_check_branch
      %137 = sbr.rel (0) target = $region25
    $region24: #{tpu_custom_call.1} parent=1 // pred_region
      %s139 = ssub.s32 128, 128
      %140 = vsyncadd [#allocation4], %s139
      %s142 = sshll.u32 [#allocation7], 4
      %s143 = int_to_ptr.vmem [resolvable:$true] %s142
      %145 = dma.vmem_to_hbm [thread:$0]  %s143, 128, %s3, [#allocation4]
    $region25: #{tpu_custom_call.1} parent=1 // pred_fallthru
      _
    // Predicated region
    $region26: #{tpu_custom_call.1} parent=1 // pred_check
      _
    $region27: #{tpu_custom_call.1} parent=1 // pred_check_branch
      %147 = sbr.rel (0) target = $region29
    $region28: #{tpu_custom_call.1} parent=1 // pred_region
      %148 = dma.done [#allocation4], 128
    $region29: #{tpu_custom_call.1} parent=1 // pred_fallthru
      _
    %149 = vsyncpa [#allocation3], 1
    %150 = vsyncpa [#allocation6], 1
    %151 = vsyncpa [#allocation4], 1

</llo_original>
